<compile_context>
chip_gen: v6e
topology: v6e:2x2x1
jax: 0.10.0
libtpu: 0.0.40
codegen_flags: <defaults>
</compile_context>

<pallas_src>
import jax
import jax.numpy as jnp
from jax import lax
from jax.experimental import pallas as pl
from jax.experimental.pallas import tpu as pltpu

VOCAB = 89  # fixed by the module: nn.Embedding(89, embed_dim)


def prev_action_emb_kernel(idx_ref, table_t_ref, out_ref):
    # idx_ref:     (1, TB)          int32   (indices on lanes)
    # table_t_ref: (E, VOCAB_PAD)   f32/bf16
    # out_ref:     (E, TB)          table dtype (lane-dense in batch)
    vocab_pad = table_t_ref.shape[1]
    tb = out_ref.shape[1]
    row_ids = lax.broadcasted_iota(jnp.int32, (vocab_pad, tb), 0)
    # Sublane broadcast of the (1, TB) index row against the row-id iota.
    onehot = (row_ids == idx_ref[...]).astype(table_t_ref.dtype)     # (VOCAB_PAD, TB)
    out_ref[...] = jnp.dot(
        table_t_ref[...], onehot, preferred_element_type=jnp.float32
    ).astype(out_ref.dtype)


def prev_action_emb(idx, table, *, block_b=256, min_pallas_batch=128):
    """Pallas equivalent of PrevActionEmb.forward -> (emb.T, None)."""
    B = idx.shape[0]
    vocab, E = table.shape
    idx = idx.astype(jnp.int32)

    # Tiny-problem guard: at these sizes the kernel is pure fixed overhead; a
    # single XLA gather + transpose fuses into the consumer and wins outright.
    if B < min_pallas_batch:
        return jnp.take(table, idx, axis=0).T, None

    # Pad the vocab (89 -> 128) so the MXU K dim is aligned, and pre-transpose
    # so the kernel emits torch.t()'s (E, B) layout directly.  In production
    # both would be done once at module init, not per call.
    vocab_pad = ((vocab + 127) // 128) * 128
    table_t = jnp.pad(table, ((0, vocab_pad - vocab), (0, 0))).T     # (E, vocab_pad)

    idx_row = idx.reshape(1, B)                                      # lane-major indices

    # Batch tile: full batch when it fits one block, otherwise a 128-aligned
    # tile so the "parallel" grid can shard across TensorCores (v7x megacore).
    if B <= block_b:
        tb = B
    else:
        tb = max(128, (block_b // 128) * 128)
    grid = (pl.cdiv(B, tb),)

    # Only raise the scoped-VMEM budget when the footprint would exceed the
    # smallest default (v5e: 16 MiB); cap at 64 MiB (v7x physical VMEM).
    itemsize = jnp.dtype(table.dtype).itemsize
    est_bytes = (
        2 * E * vocab_pad * itemsize      # table^T (double-buffered by default)
        + 2 * E * tb * itemsize           # output blocks (double-buffered)
        + vocab_pad * tb * 4              # one-hot intermediate
        + 2 * 8 * tb * 4                  # index tiles (sublane-padded)
    )
    compiler_kwargs = {}
    if est_bytes > 12 * 1024 * 1024:
        compiler_kwargs["vmem_limit_bytes"] = int(
            min(64 * 1024 * 1024, est_bytes + (4 << 20)))

    out = pl.pallas_call(
        prev_action_emb_kernel,
        out_shape=jax.ShapeDtypeStruct((E, B), table.dtype),
        grid_spec=pltpu.PrefetchScalarGridSpec(
            num_scalar_prefetch=0,
            grid=grid,
            in_specs=[
                pl.BlockSpec((1, tb), lambda i: (0, i)),          # index tile
                pl.BlockSpec((E, vocab_pad), lambda i: (0, 0)),   # table^T, grid-invariant
            ],
            out_specs=pl.BlockSpec((E, tb), lambda i: (0, i)),
        ),
        compiler_params=pltpu.CompilerParams(
            dimension_semantics=("parallel",), **compiler_kwargs),
    )(idx_row, table_t)
    return out, None


if __name__ == "__main__":
    key = jax.random.PRNGKey(0)
    k_table, k_idx = jax.random.split(key)

    embed_dim = 32  # embed_dim of the module

    # nn.Embedding default init: N(0, 1)
    table = jax.random.normal(k_table, (VOCAB, embed_dim), dtype=jnp.float32)

    # 1) Tiny batch -> XLA fallback path (gather + transpose, no pallas_call).
    idx_small = jax.random.randint(k_idx, (8,), 0, VOCAB, dtype=jnp.int32)
    out_s, aux_s = prev_action_emb(idx_small, table)
    out_s = jax.block_until_ready(out_s)
    assert aux_s is None
    assert out_s.shape == (embed_dim, 8), out_s.shape
    assert jnp.allclose(out_s, table[idx_small].T, atol=1e-6)

    # 2) Pallas path, single grid step (B == batch tile).
    idx_med = jax.random.randint(jax.random.fold_in(k_idx, 1), (256,), 0, VOCAB,
                                 dtype=jnp.int32)
    out_m, aux_m = prev_action_emb(idx_med, table)
    out_m = jax.block_until_ready(out_m)
    assert aux_m is None
    assert out_m.shape == (embed_dim, 256), out_m.shape
    assert out_m.dtype == jnp.float32
    assert jnp.allclose(out_m, table[idx_med].T, atol=1e-6)

    # 3) Pallas path, multi-step grid with a partial trailing block
    #    (600 = 2*256 + 88) to exercise masked tail stores.
    idx_big = jax.random.randint(jax.random.fold_in(k_idx, 2), (600,), 0, VOCAB,
                                 dtype=jnp.int32)
    out_b, aux_b = prev_action_emb(idx_big, table)
    out_b = jax.block_until_ready(out_b)
    assert aux_b is None
    assert out_b.shape == (embed_dim, 600), out_b.shape
    assert jnp.allclose(out_b, table[idx_big].T, atol=1e-6)

    print("KERNEL_OK")
</pallas_src>

<mosaic_0001>
module attributes {stable_mosaic.version = 11 : i64} {
  func.func @prev_action_emb_kernel(%arg0: i32, %arg1: memref<1x256xi32, #tpu.memory_space<vmem>>, %arg2: memref<32x128xf32, #tpu.memory_space<vmem>>, %arg3: memref<32x256xf32, #tpu.memory_space<vmem>>) attributes {dimension_semantics = [#tpu.dimension_semantics<parallel>], iteration_bounds = array<i64: 1>, scalar_prefetch = 0 : i64, scratch_operands = 0 : i64, tpu.core_type = #tpu.core_type<tc>, window_params = [{transform_indices = @transform_0, window_bounds = array<i64: 1, 256>}, {pipeline_mode = #tpu.pipeline_mode<synchronous>, transform_indices = @transform_1, window_bounds = array<i64: 32, 128>}, {transform_indices = @transform_2, window_bounds = array<i64: 32, 256>}]} {
    %0 = tpu.iota {dimensions = array<i32: 0>} : vector<128x256xi32>
    %c0 = arith.constant 0 : index
    %c0_0 = arith.constant 0 : index
    %1 = vector.load %arg1[%c0, %c0_0] : memref<1x256xi32, #tpu.memory_space<vmem>>, vector<1x256xi32>
    %2 = vector.broadcast %1 : vector<1x256xi32> to vector<128x256xi32>
    %3 = arith.cmpi eq, %0, %2 : vector<128x256xi32>
    %4 = arith.extui %3 : vector<128x256xi1> to vector<128x256xi32>
    %5 = arith.sitofp %4 : vector<128x256xi32> to vector<128x256xf32>
    %c0_1 = arith.constant 0 : index
    %c0_2 = arith.constant 0 : index
    %6 = vector.load %arg2[%c0_1, %c0_2] : memref<32x128xf32, #tpu.memory_space<vmem>>, vector<32x128xf32>
    %cst = arith.constant dense<0.000000e+00> : vector<32x256xf32>
    %7 = tpu.matmul %6, %5, %cst {dimension_numbers = #tpu.dot_dimension_numbers<[1], [0], [0], [1], [0, 0, 1, 1], [], []>} : vector<32x128xf32>, vector<128x256xf32>, vector<32x256xf32> -> vector<32x256xf32>
    %c0_3 = arith.constant 0 : index
    %c0_4 = arith.constant 0 : index
    %8 = vector.load %arg3[%c0_3, %c0_4] : memref<32x256xf32, #tpu.memory_space<vmem>>, vector<32x256xf32>
    tpu.vector_store %arg3[%c0_3, %c0_4], %7 {strides = array<i32>} : memref<32x256xf32, #tpu.memory_space<vmem>>, vector<32x256xf32>,
    return
  }
  func.func @transform_0(%arg0: i32) -> (i32, i32) {
    %c0_i32 = arith.constant 0 : i32
    %c0_i32_0 = arith.constant 0 : i32
    return %c0_i32, %arg0 : i32, i32
  }
  func.func @transform_1(%arg0: i32) -> (i32, i32) {
    %c0_i32 = arith.constant 0 : i32
    %c0_i32_0 = arith.constant 0 : i32
    %c0_i32_1 = arith.constant 0 : i32
    return %c0_i32, %c0_i32_0 : i32, i32
  }
  func.func @transform_2(%arg0: i32) -> (i32, i32) {
    %c0_i32 = arith.constant 0 : i32
    %c0_i32_0 = arith.constant 0 : i32
    return %c0_i32, %arg0 : i32, i32
  }
}

</mosaic_0001>

<llo_original>
// kernel: tpu_custom_call.1
$region0: #{tpu_custom_call.1}
  #allocation0 [shape = 'u32[]', space=smem, size = 0x4, offset = 0x4, fixed_abs, tag = 'smem constant byte address 0x4 - core index']
  #allocation1 [shape = 'u32[144,128]{1,0:T(1,128)}', space=vmem, size = 0x12000, scoped, tag = 'internal scratch']
  %s0 = inlined_call_operand.hbm [shape: s32[1,256], index: 0, kind: input, shape index: {}]
  %s1 = inlined_call_operand.hbm [shape: f32[32,128], index: 1, kind: input, shape index: {}]
  %s2 = inlined_call_operand.hbm [shape: f32[32,256], index: 2, kind: output, shape index: {}]
  %s3 = sld [smem:[#allocation0]]
  $region26: #{tpu_custom_call.1} parent=0
    _
  %s5 = ssub.s32 1, %s3
  %s6 = scalar_select 0, %s5, %s3
  $region1: #{tpu_custom_call.1} parent=0
    #allocation2 [shape = 'u8[1024]{0}', space=vmem, size = 0x400, scoped, tag = 'input window, operand 0, single buffered']
    #allocation3 [shape = 's32[1]{0}', space=sflag, size = 0x4, scoped, tag = 'scoped memory for tpu_custom_call.1']
    #allocation4 [shape = 's32[1]{0}', space=sflag, size = 0x4, scoped, tag = 'scoped memory for tpu_custom_call.1']
    #allocation5 [shape = 'u8[16384]{0}', space=vmem, size = 0x4000, scoped, tag = 'input window, operand 1, single buffered']
    #allocation6 [shape = 's32[1]{0}', space=sflag, size = 0x4, scoped, tag = 'scoped memory for tpu_custom_call.1']
    #allocation7 [shape = 'u8[32768]{0}', space=vmem, size = 0x8000, scoped, tag = 'output window, operand 0, single buffered']
    %7 = vsyncpa [#allocation3], 0
    %8 = vsyncpa [#allocation6], 0
    %9 = vsyncpa [#allocation4], 0
    // Predicated region
    $region2: #{tpu_custom_call.1} parent=1 // pred_check
      _
    $region3: #{tpu_custom_call.1} parent=1 // pred_check_branch
      %11 = sbr.rel (0) target = $region5
    $region4: #{tpu_custom_call.1} parent=1 // pred_region
      %s13 = ssub.s32 32, 32
      %14 = vsyncadd [#allocation3], %s13
      %s16 = sshll.u32 [#allocation2], 4
      %s17 = int_to_ptr.vmem [resolvable:$true] %s16
      %19 = dma.hbm_to_vmem [thread:$0]  %s0, 32, %s17, [#allocation3]
    $region5: #{tpu_custom_call.1} parent=1 // pred_fallthru
      _
    // Predicated region
    $region6: #{tpu_custom_call.1} parent=1 // pred_check
      _
    $region7: #{tpu_custom_call.1} parent=1 // pred_check_branch
      %21 = sbr.rel (0) target = $region9
    $region8: #{tpu_custom_call.1} parent=1 // pred_region
      %s23 = ssub.s32 512, 512
      %24 = vsyncadd [#allocation6], %s23
      %s25 = sshll.u32 [#allocation5], 4
      %s26 = int_to_ptr.vmem [resolvable:$true] %s25
      %31 = dma.hbm_to_vmem [thread:$0]  %s1, 512, %s26, [#allocation6], 128, 128, 8
    $region9: #{tpu_custom_call.1} parent=1 // pred_fallthru
      _
    // Predicated region
    $region10: #{tpu_custom_call.1} parent=1 // pred_check
      _
    $region11: #{tpu_custom_call.1} parent=1 // pred_check_branch
      %33 = sbr.rel (0) target = $region13
    $region12: #{tpu_custom_call.1} parent=1 // pred_region
      %34 = dma.done [#allocation3], 32
    $region13: #{tpu_custom_call.1} parent=1 // pred_fallthru
      _
    // Predicated region
    $region14: #{tpu_custom_call.1} parent=1 // pred_check
      _
    $region15: #{tpu_custom_call.1} parent=1 // pred_check_branch
      %36 = sbr.rel (0) target = $region17
    $region16: #{tpu_custom_call.1} parent=1 // pred_region
      %37 = dma.done [#allocation6], 512
    $region17: #{tpu_custom_call.1} parent=1 // pred_fallthru
      _
    %v38 = vlaneseq
    %v39 = vshrl.u32 %v38, 7
    %v40 = vadd.s32 %v39, 8
    %v41 = vadd.s32 %v39, 16
    %v42 = vadd.s32 %v39, 24
    %v43 = vadd.s32 %v39, 32
    %v44 = vadd.s32 %v39, 40
    %v45 = vadd.s32 %v39, 48
    %v46 = vadd.s32 %v39, 56
    %v47 = vadd.s32 %v39, 64
    %v48 = vadd.s32 %v39, 72
    %v49 = vadd.s32 %v39, 80
    %v50 = vadd.s32 %v39, 88
    %v51 = vadd.s32 %v39, 96
    %v52 = vadd.s32 %v39, 104
    %v53 = vadd.s32 %v39, 112
    %v54 = vadd.s32 %v39, 120
    %v55 = vld [vmem:[#allocation2] sm:$0x3]
    %v56 = vlaneseq
    %v57 = vshrl.u32 %v56, 7
    %v58 = vsub.s32 0, %v57
    %v59 = vrot.slane %v55, %v58
    %v60 = vlaneseq
    %v61 = vshrl.u32 %v60, 7
    %v62 = vsub.s32 1, %v61
    %v63 = vrot.slane %v55, %v62
    %vm64 = vcmp.eq.s32.totalorder %v39, %v59
    %vm65 = vcmp.eq.s32.totalorder %v39, %v63
    %vm66 = vcmp.eq.s32.totalorder %v40, %v59
    %vm67 = vcmp.eq.s32.totalorder %v40, %v63
    %vm68 = vcmp.eq.s32.totalorder %v41, %v59
    %vm69 = vcmp.eq.s32.totalorder %v41, %v63
    %vm70 = vcmp.eq.s32.totalorder %v42, %v59
    %vm71 = vcmp.eq.s32.totalorder %v42, %v63
    %vm72 = vcmp.eq.s32.totalorder %v43, %v59
    %vm73 = vcmp.eq.s32.totalorder %v43, %v63
    %vm74 = vcmp.eq.s32.totalorder %v44, %v59
    %vm75 = vcmp.eq.s32.totalorder %v44, %v63
    %vm76 = vcmp.eq.s32.totalorder %v45, %v59
    %vm77 = vcmp.eq.s32.totalorder %v45, %v63
    %vm78 = vcmp.eq.s32.totalorder %v46, %v59
    %vm79 = vcmp.eq.s32.totalorder %v46, %v63
    %vm80 = vcmp.eq.s32.totalorder %v47, %v59
    %vm81 = vcmp.eq.s32.totalorder %v47, %v63
    %vm82 = vcmp.eq.s32.totalorder %v48, %v59
    %vm83 = vcmp.eq.s32.totalorder %v48, %v63
    %vm84 = vcmp.eq.s32.totalorder %v49, %v59
    %vm85 = vcmp.eq.s32.totalorder %v49, %v63
    %vm86 = vcmp.eq.s32.totalorder %v50, %v59
    %vm87 = vcmp.eq.s32.totalorder %v50, %v63
    %vm88 = vcmp.eq.s32.totalorder %v51, %v59
    %vm89 = vcmp.eq.s32.totalorder %v51, %v63
    %vm90 = vcmp.eq.s32.totalorder %v52, %v59
    %vm91 = vcmp.eq.s32.totalorder %v52, %v63
    %vm92 = vcmp.eq.s32.totalorder %v53, %v59
    %vm93 = vcmp.eq.s32.totalorder %v53, %v63
    %vm94 = vcmp.eq.s32.totalorder %v54, %v59
    %vm95 = vcmp.eq.s32.totalorder %v54, %v63
    %v96 = vsel %vm64, 1, 0
    %v97 = vsel %vm65, 1, 0
    %v98 = vsel %vm66, 1, 0
    %v99 = vsel %vm67, 1, 0
    %v100 = vsel %vm68, 1, 0
    %v101 = vsel %vm69, 1, 0
    %v102 = vsel %vm70, 1, 0
    %v103 = vsel %vm71, 1, 0
    %v104 = vsel %vm72, 1, 0
    %v105 = vsel %vm73, 1, 0
    %v106 = vsel %vm74, 1, 0
    %v107 = vsel %vm75, 1, 0
    %v108 = vsel %vm76, 1, 0
    %v109 = vsel %vm77, 1, 0
    %v110 = vsel %vm78, 1, 0
    %v111 = vsel %vm79, 1, 0
    %v112 = vsel %vm80, 1, 0
    %v113 = vsel %vm81, 1, 0
    %v114 = vsel %vm82, 1, 0
    %v115 = vsel %vm83, 1, 0
    %v116 = vsel %vm84, 1, 0
    %v117 = vsel %vm85, 1, 0
    %v118 = vsel %vm86, 1, 0
    %v119 = vsel %vm87, 1, 0
    %v120 = vsel %vm88, 1, 0
    %v121 = vsel %vm89, 1, 0
    %v122 = vsel %vm90, 1, 0
    %v123 = vsel %vm91, 1, 0
    %v124 = vsel %vm92, 1, 0
    %v125 = vsel %vm93, 1, 0
    %v126 = vsel %vm94, 1, 0
    %v127 = vsel %vm95, 1, 0
    %v128 = vcvt.s32.f32 %v96
    %v129 = vcvt.s32.f32 %v97
    %v130 = vcvt.s32.f32 %v98
    %v131 = vcvt.s32.f32 %v99
    %v132 = vcvt.s32.f32 %v100
    %v133 = vcvt.s32.f32 %v101
    %v134 = vcvt.s32.f32 %v102
    %v135 = vcvt.s32.f32 %v103
    %v136 = vcvt.s32.f32 %v104
    %v137 = vcvt.s32.f32 %v105
    %v138 = vcvt.s32.f32 %v106
    %v139 = vcvt.s32.f32 %v107
    %v140 = vcvt.s32.f32 %v108
    %v141 = vcvt.s32.f32 %v109
    %v142 = vcvt.s32.f32 %v110
    %v143 = vcvt.s32.f32 %v111
    %v144 = vcvt.s32.f32 %v112
    %v145 = vcvt.s32.f32 %v113
    %v146 = vcvt.s32.f32 %v114
    %v147 = vcvt.s32.f32 %v115
    %v148 = vcvt.s32.f32 %v116
    %v149 = vcvt.s32.f32 %v117
    %v150 = vcvt.s32.f32 %v118
    %v151 = vcvt.s32.f32 %v119
    %v152 = vcvt.s32.f32 %v120
    %v153 = vcvt.s32.f32 %v121
    %v154 = vcvt.s32.f32 %v122
    %v155 = vcvt.s32.f32 %v123
    %v156 = vcvt.s32.f32 %v124
    %v157 = vcvt.s32.f32 %v125
    %v158 = vcvt.s32.f32 %v126
    %v159 = vcvt.s32.f32 %v127
    %v160 = vld [vmem:[#allocation5] sm:$0xff]
    %v161 = vld [vmem:[#allocation5 + $0x8] sm:$0xff]
    %v162 = vld [vmem:[#allocation5 + $0x10] sm:$0xff]
    %v163 = vld [vmem:[#allocation5 + $0x18] sm:$0xff]
    %164 = vmatprep.subr.mxu0 %v159
    %165 = vmatpush1.msra.mxu0 %v158
    %166 = vmatprep.subr.mxu0 %v157
    %167 = vmatpush1.msra.mxu0 %v156
    %168 = vmatprep.subr.mxu0 %v155
    %169 = vmatpush1.msra.mxu0 %v154
    %170 = vmatprep.subr.mxu0 %v153
    %171 = vmatpush1.msra.mxu0 %v152
    %172 = vmatprep.subr.mxu0 %v151
    %173 = vmatpush1.msra.mxu0 %v150
    %174 = vmatprep.subr.mxu0 %v149
    %175 = vmatpush1.msra.mxu0 %v148
    %176 = vmatprep.subr.mxu0 %v147
    %177 = vmatpush1.msra.mxu0 %v146
    %178 = vmatprep.subr.mxu0 %v145
    %179 = vmatpush1.msra.mxu0 %v144
    %180 = vmatprep.subr.mxu0 %v143
    %181 = vmatpush1.msra.mxu0 %v142
    %182 = vmatprep.subr.mxu0 %v141
    %183 = vmatpush1.msra.mxu0 %v140
    %184 = vmatprep.subr.mxu0 %v139
    %185 = vmatpush1.msra.mxu0 %v138
    %186 = vmatprep.subr.mxu0 %v137
    %187 = vmatpush1.msra.mxu0 %v136
    %188 = vmatprep.subr.mxu0 %v135
    %189 = vmatpush1.msra.mxu0 %v134
    %190 = vmatprep.subr.mxu0 %v133
    %191 = vmatpush1.msra.mxu0 %v132
    %192 = vmatprep.subr.mxu0 %v131
    %193 = vmatpush1.msra.mxu0 %v130
    %194 = vmatprep.subr.mxu0 %v129
    %195 = vmatpush1.msra.mxu0 %v128
    %196 = vmatprep.subr.mxu0 0.0
    %197 = vmatpush2.msra.mxu0 0.0
    %198 = vmatprep.subr.mxu0 0.0
    %199 = vmatpush2.msra.mxu0 0.0
    %200 = vmatprep.subr.mxu0 0.0
    %201 = vmatpush2.msra.mxu0 0.0
    %202 = vmatprep.subr.mxu0 0.0
    %203 = vmatpush2.msra.mxu0 0.0
    %204 = vmatprep.subr.mxu0 0.0
    %205 = vmatpush2.msra.mxu0 0.0
    %206 = vmatprep.subr.mxu0 0.0
    %207 = vmatpush2.msra.mxu0 0.0
    %208 = vmatprep.subr.mxu0 0.0
    %209 = vmatpush2.msra.mxu0 0.0
    %210 = vmatprep.subr.mxu0 0.0
    %211 = vmatpush2.msra.mxu0 0.0
    %212 = vmatprep.subr.mxu0 0.0
    %213 = vmatpush2.msra.mxu0 0.0
    %214 = vmatprep.subr.mxu0 0.0
    %215 = vmatpush2.msra.mxu0 0.0
    %216 = vmatprep.subr.mxu0 0.0
    %217 = vmatpush2.msra.mxu0 0.0
    %218 = vmatprep.subr.mxu0 0.0
    %219 = vmatpush2.msra.mxu0 0.0
    %220 = vmatprep.subr.mxu0 0.0
    %221 = vmatpush2.msra.mxu0 0.0
    %222 = vmatprep.subr.mxu0 0.0
    %223 = vmatpush2.msra.mxu0 0.0
    %224 = vmatprep.subr.mxu0 0.0
    %225 = vmatpush2.msra.mxu0 0.0
    %226 = vmatprep.subr.mxu0 0.0
    %227 = vmatpush2.msra.mxu0 0.0
    %228 = vmatprep.mubr.f32.mxu0 0.0
    %229 = vmatmul.mubr.f32.gmra.mxu0 %v160
    %v230 = vpop.f32.mrf.mxu0
    %v231 = vadd.f32 0.0, %v230
    %v232 = vpop.f32.mrf.mxu0
    %v233 = vadd.f32 0.0, %v232
    %234 = vmatprep.mubr.f32.mxu0 0.0
    %235 = vmatmul.mubr.f32.gmra.mxu0 %v161
    %v236 = vpop.f32.mrf.mxu0
    %v237 = vadd.f32 0.0, %v236
    %v238 = vpop.f32.mrf.mxu0
    %v239 = vadd.f32 0.0, %v238
    %240 = vmatprep.mubr.f32.mxu0 0.0
    %241 = vmatmul.mubr.f32.gmra.mxu0 %v162
    %v242 = vpop.f32.mrf.mxu0
    %v243 = vadd.f32 0.0, %v242
    %v244 = vpop.f32.mrf.mxu0
    %v245 = vadd.f32 0.0, %v244
    %246 = vmatprep.mubr.f32.mxu0 0.0
    %247 = vmatmul.mubr.f32.gmra.mxu0 %v163
    %v248 = vpop.f32.mrf.mxu0
    %v249 = vadd.f32 0.0, %v248
    %v250 = vpop.f32.mrf.mxu0
    %v251 = vadd.f32 0.0, %v250
    %252 = vdwg.mxu0
    %253 = vst [vmem:[#allocation7] sm:$0xff] %v231
    %254 = vst [vmem:[#allocation7 + $0x8] sm:$0xff] %v233
    %255 = vst [vmem:[#allocation7 + $0x10] sm:$0xff] %v237
    %256 = vst [vmem:[#allocation7 + $0x18] sm:$0xff] %v239
    %257 = vst [vmem:[#allocation7 + $0x20] sm:$0xff] %v243
    %258 = vst [vmem:[#allocation7 + $0x28] sm:$0xff] %v245
    %259 = vst [vmem:[#allocation7 + $0x30] sm:$0xff] %v249
    %260 = vst [vmem:[#allocation7 + $0x38] sm:$0xff] %v251
    // Predicated region
    $region18: #{tpu_custom_call.1} parent=1 // pred_check
      _
    $region19: #{tpu_custom_call.1} parent=1 // pred_check_branch
      %262 = sbr.rel (0) target = $region21
    $region20: #{tpu_custom_call.1} parent=1 // pred_region
      %s264 = ssub.s32 1024, 1024
      %265 = vsyncadd [#allocation4], %s264
      %s266 = sshll.u32 [#allocation7], 4
      %s267 = int_to_ptr.vmem [resolvable:$true] %s266
      %272 = dma.vmem_to_hbm [thread:$0]  %s267, 1024, %s2, [#allocation4], 256, 256, 16
    $region21: #{tpu_custom_call.1} parent=1 // pred_fallthru
      _
    // Predicated region
    $region22: #{tpu_custom_call.1} parent=1 // pred_check
      _
    $region23: #{tpu_custom_call.1} parent=1 // pred_check_branch
      %274 = sbr.rel (0) target = $region25
    $region24: #{tpu_custom_call.1} parent=1 // pred_region
      %275 = dma.done [#allocation4], 1024
    $region25: #{tpu_custom_call.1} parent=1 // pred_fallthru
      _
    %276 = vsyncpa [#allocation3], 1
    %277 = vsyncpa [#allocation6], 1
    %278 = vsyncpa [#allocation4], 1

</llo_original>
